<compile_context>
chip_gen: v6e
topology: v6e:2x2x1
jax: 0.10.0
libtpu: 0.0.40
codegen_flags: <defaults>
</compile_context>

<pallas_src>
import functools

import jax
import jax.numpy as jnp
import numpy as np
from jax.experimental import pallas as pl
from jax.experimental.pallas import tpu as pltpu


def _bottleneck_kernel(x_ref, m_ref, w1_ref, b1_ref, w2_ref, b2_ref, o_ref, *, W):
    # x_ref : (CP, LB)        channel-padded activations, LB = (images/step)*H*W
    # m_ref : (9*CP, LB)      0/1 validity mask, pre-broadcast per tap & channel
    # w1_ref: (C2, 9*CP)      conv1 weights (BN1 scale folded), tap-major K
    # b1_ref: (C2, LB)        folded BN1 bias, pre-broadcast over lanes
    # w2_ref: (CP, C2)        conv2 weights (BN2 scale folded), padded out rows
    # b2_ref: (CP, LB)        folded BN2 bias, pre-broadcast over lanes
    # o_ref : (CP, LB)
    x = x_ref[...]                                      # (CP, LB) f32
    LB = x.shape[1]

    # im2col: 9 lane-rolls (XLU slot, overlaps VPU/MXU work).  CP = 8 makes
    # every tap a full vreg row group, so the concat is aligned placement.
    taps = []
    for oy in (-1, 0, 1):
        for ox in (-1, 0, 1):
            s = oy * W + ox                             # flat-index tap offset
            taps.append(x if s == 0 else pltpu.roll(x, shift=(-s) % LB, axis=1))
    patch = jnp.concatenate(taps, axis=0)               # (9*CP, LB)

    # One aligned full-width multiply zeroes all padded / cross-image pixels.
    patch = patch * m_ref[...]

    # conv1 (3x3) as ONE fused K=9*CP MXU matmul, weights as LHS -> (C2, LB).
    h = jnp.dot(w1_ref[...], patch, preferred_element_type=jnp.float32)
    h = jnp.maximum(h + b1_ref[...], 0.0)               # folded BN1 bias + ReLU

    # conv2 (1x1) -> (CP, LB), folded BN2 bias + ReLU.
    y = jnp.dot(w2_ref[...], h, preferred_element_type=jnp.float32)
    y = jnp.maximum(y + b2_ref[...], 0.0)

    o_ref[...] = y + x                                  # residual add


def _build_tap_masks(H, W):
    """(9, H*W) 0/1 masks: validity of each 3x3 tap under pad=1 zero-padding."""
    hh = np.arange(H)[:, None]
    ww = np.arange(W)[None, :]
    masks = []
    for oy in (-1, 0, 1):
        for ox in (-1, 0, 1):
            valid = ((hh + oy >= 0) & (hh + oy < H) &
                     (ww + ox >= 0) & (ww + ox < W))
            masks.append(valid.reshape(H * W))
    return jnp.asarray(np.stack(masks, 0).astype(np.float32))


def bottleneck_forward(x_nchw, w1_lhs, b1_vec, w2_lhs, b2_vec, mask9, H, W):
    """x_nchw: (N, C, H, W) f32.  Weights BN-folded & channel-padded. Returns NCHW."""
    N, C = x_nchw.shape[0], x_nchw.shape[1]
    HW = H * W
    C2 = w1_lhs.shape[0]
    CP = w2_lhs.shape[0]                                 # padded channel count

    # >=2 programs when possible (both v7x TensorCores); otherwise one body.
    n_groups = 2 if (N % 2 == 0 and N >= 2 and ((N // 2) * HW) % 128 == 0) else 1
    nb = N // n_groups                                   # images per grid step
    LB = nb * HW                                         # lane width per step

    # NCHW -> channel-padded, lane-dense (CP, N*HW): batch folds into matmul
    # columns.  All layout plumbing is tiny wrapper-side XLA work.
    x = x_nchw.astype(jnp.float32)
    x = jnp.pad(x, ((0, 0), (0, CP - C), (0, 0), (0, 0)))
    x_t = jnp.transpose(x.reshape(N, CP, HW), (1, 0, 2)).reshape(CP, N * HW)

    # Resident per-step constants (constant-index BlockSpecs):
    mask_blk = jnp.tile(jnp.repeat(mask9, CP, axis=0), (1, nb))   # (9*CP, LB)
    b1_full = jnp.broadcast_to(b1_vec[:, None], (C2, LB))
    b2_full = jnp.broadcast_to(b2_vec[:, None], (CP, LB))

    out = pl.pallas_call(
        functools.partial(_bottleneck_kernel, W=W),
        out_shape=jax.ShapeDtypeStruct((CP, N * HW), jnp.float32),
        grid_spec=pltpu.PrefetchScalarGridSpec(
            num_scalar_prefetch=0,
            grid=(n_groups,),
            in_specs=[
                pl.BlockSpec((CP, LB), lambda g: (0, g)),         # x (also residual)
                pl.BlockSpec((9 * CP, LB), lambda g: (0, 0)),     # tap masks
                pl.BlockSpec((C2, 9 * CP), lambda g: (0, 0)),     # conv1 (BN folded)
                pl.BlockSpec((C2, LB), lambda g: (0, 0)),         # bias1 (broadcast)
                pl.BlockSpec((CP, C2), lambda g: (0, 0)),         # conv2 (BN folded)
                pl.BlockSpec((CP, LB), lambda g: (0, 0)),         # bias2 (broadcast)
            ],
            out_specs=pl.BlockSpec((CP, LB), lambda g: (0, g)),
        ),
        compiler_params=pltpu.CompilerParams(dimension_semantics=("parallel",)),
    )(x_t, mask_blk, w1_lhs, b1_full, w2_lhs, b2_full)

    # (CP, N*HW) -> (N, C, H, W): drop padded channels, restore NCHW.
    out = out.reshape(CP, N, HW).transpose(1, 0, 2)[:, :C]
    return out.reshape(N, C, H, W)


def _reference(x_nchw, w1_oihw, s1, b1, w2_oihw, s2, b2):
    """Pure-JAX reference (XLA convs) for correctness checking."""
    dn = ('NCHW', 'OIHW', 'NCHW')
    y = jax.lax.conv_general_dilated(x_nchw, w1_oihw, (1, 1), 'SAME',
                                     dimension_numbers=dn)
    y = jnp.maximum(y * s1[None, :, None, None] + b1[None, :, None, None], 0.0)
    z = jax.lax.conv_general_dilated(y, w2_oihw, (1, 1), 'SAME',
                                     dimension_numbers=dn)
    z = jnp.maximum(z * s2[None, :, None, None] + b2[None, :, None, None], 0.0)
    return z + x_nchw


if __name__ == "__main__":
    # Module config: in_channels=4, ex_ratio=2.0  ->  C=4, C2=8
    N, C, H, W = 2, 4, 16, 16
    C2 = int(C * 2.0)
    CP = 8                                # channels padded to one sublane group
    eps = 1e-5

    key = jax.random.PRNGKey(0)
    ks = jax.random.split(key, 12)

    x = jax.random.normal(ks[0], (N, C, H, W), jnp.float32)

    # Deterministic parameter init (PyTorch layouts: OIHW conv weights).
    w1_oihw = 0.1 * jax.random.normal(ks[1], (C2, C, 3, 3), jnp.float32)
    w2_oihw = 0.1 * jax.random.normal(ks[2], (C, C2, 1, 1), jnp.float32)
    gamma1 = 1.0 + 0.1 * jax.random.normal(ks[3], (C2,), jnp.float32)
    beta1 = 0.05 * jax.random.normal(ks[4], (C2,), jnp.float32)
    mean1 = 0.1 * jax.random.normal(ks[5], (C2,), jnp.float32)
    var1 = jax.random.uniform(ks[6], (C2,), jnp.float32, 0.5, 1.5)
    gamma2 = 1.0 + 0.1 * jax.random.normal(ks[7], (C,), jnp.float32)
    beta2 = 0.05 * jax.random.normal(ks[8], (C,), jnp.float32)
    mean2 = 0.1 * jax.random.normal(ks[9], (C,), jnp.float32)
    var2 = jax.random.uniform(ks[10], (C,), jnp.float32, 0.5, 1.5)

    # Fold inference-mode BN into per-channel scale / bias.
    s1 = gamma1 / jnp.sqrt(var1 + eps)
    b1 = beta1 - s1 * mean1
    s2 = gamma2 / jnp.sqrt(var2 + eps)
    b2 = beta2 - s2 * mean2

    # Repack conv weights for the kernel (weights-as-LHS, BN scale folded,
    # input/output channels zero-padded to CP):
    #   Conv1 (C2, C, 3, 3) -> (C2, ky, kx, C) -> pad C->CP -> (C2, 9*CP)
    #   Conv2 (C, C2, 1, 1) -> (C, C2) -> pad rows C->CP -> (CP, C2)
    w1_t = jnp.transpose(w1_oihw, (0, 2, 3, 1))                    # (C2,3,3,C)
    w1_t = jnp.pad(w1_t, ((0, 0), (0, 0), (0, 0), (0, CP - C)))
    w1_lhs = w1_t.reshape(C2, 9 * CP) * s1[:, None]
    w2_lhs = jnp.pad(w2_oihw[:, :, 0, 0] * s2[:, None], ((0, CP - C), (0, 0)))
    b2_pad = jnp.pad(b2, (0, CP - C))

    mask9 = _build_tap_masks(H, W)

    out = bottleneck_forward(x, w1_lhs, b1, w2_lhs, b2_pad, mask9, H, W)
    out = jax.block_until_ready(out)

    ref = _reference(x, w1_oihw, s1, b1, w2_oihw, s2, b2)
    np.testing.assert_allclose(np.asarray(out), np.asarray(ref),
                               rtol=1e-4, atol=1e-4)
    print("KERNEL_OK")
</pallas_src>

<mosaic_0001>
module attributes {stable_mosaic.version = 11 : i64} {
  func.func @_bottleneck_kernel(%arg0: i32, %arg1: memref<8x256xf32, #tpu.memory_space<vmem>>, %arg2: memref<72x256xf32, #tpu.memory_space<vmem>>, %arg3: memref<8x72xf32, #tpu.memory_space<vmem>>, %arg4: memref<8x256xf32, #tpu.memory_space<vmem>>, %arg5: memref<8x8xf32, #tpu.memory_space<vmem>>, %arg6: memref<8x256xf32, #tpu.memory_space<vmem>>, %arg7: memref<8x256xf32, #tpu.memory_space<vmem>>) attributes {dimension_semantics = [#tpu.dimension_semantics<parallel>], iteration_bounds = array<i64: 2>, scalar_prefetch = 0 : i64, scratch_operands = 0 : i64, tpu.core_type = #tpu.core_type<tc>, window_params = [{transform_indices = @transform_0, window_bounds = array<i64: 8, 256>}, {pipeline_mode = #tpu.pipeline_mode<synchronous>, transform_indices = @transform_1, window_bounds = array<i64: 72, 256>}, {pipeline_mode = #tpu.pipeline_mode<synchronous>, transform_indices = @transform_2, window_bounds = array<i64: 8, 72>}, {pipeline_mode = #tpu.pipeline_mode<synchronous>, transform_indices = @transform_3, window_bounds = array<i64: 8, 256>}, {pipeline_mode = #tpu.pipeline_mode<synchronous>, transform_indices = @transform_4, window_bounds = array<i64: 8, 8>}, {pipeline_mode = #tpu.pipeline_mode<synchronous>, transform_indices = @transform_5, window_bounds = array<i64: 8, 256>}, {transform_indices = @transform_6, window_bounds = array<i64: 8, 256>}]} {
    %c0 = arith.constant 0 : index
    %c0_0 = arith.constant 0 : index
    %0 = vector.load %arg1[%c0, %c0_0] : memref<8x256xf32, #tpu.memory_space<vmem>>, vector<8x256xf32>
    %c17_i32 = arith.constant 17 : i32
    %1 = tpu.dynamic_rotate %0 by %c17_i32 dim 1 : vector<8x256xf32>, i32 -> vector<8x256xf32>
    %c16_i32 = arith.constant 16 : i32
    %2 = tpu.dynamic_rotate %0 by %c16_i32 dim 1 : vector<8x256xf32>, i32 -> vector<8x256xf32>
    %c15_i32 = arith.constant 15 : i32
    %3 = tpu.dynamic_rotate %0 by %c15_i32 dim 1 : vector<8x256xf32>, i32 -> vector<8x256xf32>
    %c1_i32 = arith.constant 1 : i32
    %4 = tpu.dynamic_rotate %0 by %c1_i32 dim 1 : vector<8x256xf32>, i32 -> vector<8x256xf32>
    %c255_i32 = arith.constant 255 : i32
    %5 = tpu.dynamic_rotate %0 by %c255_i32 dim 1 : vector<8x256xf32>, i32 -> vector<8x256xf32>
    %c241_i32 = arith.constant 241 : i32
    %6 = tpu.dynamic_rotate %0 by %c241_i32 dim 1 : vector<8x256xf32>, i32 -> vector<8x256xf32>
    %c240_i32 = arith.constant 240 : i32
    %7 = tpu.dynamic_rotate %0 by %c240_i32 dim 1 : vector<8x256xf32>, i32 -> vector<8x256xf32>
    %c239_i32 = arith.constant 239 : i32
    %8 = tpu.dynamic_rotate %0 by %c239_i32 dim 1 : vector<8x256xf32>, i32 -> vector<8x256xf32>
    %9 = tpu.concatenate %1, %2, %3, %4, %0, %5, %6, %7, %8 in 0 : vector<8x256xf32>, vector<8x256xf32>, vector<8x256xf32>, vector<8x256xf32>, vector<8x256xf32>, vector<8x256xf32>, vector<8x256xf32>, vector<8x256xf32>, vector<8x256xf32> -> vector<72x256xf32>
    %c0_1 = arith.constant 0 : index
    %c0_2 = arith.constant 0 : index
    %10 = vector.load %arg2[%c0_1, %c0_2] : memref<72x256xf32, #tpu.memory_space<vmem>>, vector<72x256xf32>
    %11 = arith.mulf %9, %10 : vector<72x256xf32>
    %c0_3 = arith.constant 0 : index
    %c0_4 = arith.constant 0 : index
    %12 = vector.load %arg3[%c0_3, %c0_4] : memref<8x72xf32, #tpu.memory_space<vmem>>, vector<8x72xf32>
    %cst = arith.constant dense<0.000000e+00> : vector<8x256xf32>
    %13 = tpu.matmul %12, %11, %cst {dimension_numbers = #tpu.dot_dimension_numbers<[1], [0], [0], [1], [0, 0, 1, 1], [], []>} : vector<8x72xf32>, vector<72x256xf32>, vector<8x256xf32> -> vector<8x256xf32>
    %c0_5 = arith.constant 0 : index
    %c0_6 = arith.constant 0 : index
    %14 = vector.load %arg4[%c0_5, %c0_6] : memref<8x256xf32, #tpu.memory_space<vmem>>, vector<8x256xf32>
    %15 = arith.addf %13, %14 : vector<8x256xf32>
    %cst_7 = arith.constant 0.000000e+00 : f32
    %16 = vector.broadcast %cst_7 : f32 to vector<8x256xf32>
    %17 = arith.maximumf %15, %16 : vector<8x256xf32>
    %c0_8 = arith.constant 0 : index
    %c0_9 = arith.constant 0 : index
    %18 = vector.load %arg5[%c0_8, %c0_9] : memref<8x8xf32, #tpu.memory_space<vmem>>, vector<8x8xf32>
    %cst_10 = arith.constant dense<0.000000e+00> : vector<8x256xf32>
    %19 = tpu.matmul %18, %17, %cst_10 {dimension_numbers = #tpu.dot_dimension_numbers<[1], [0], [0], [1], [0, 0, 1, 1], [], []>} : vector<8x8xf32>, vector<8x256xf32>, vector<8x256xf32> -> vector<8x256xf32>
    %c0_11 = arith.constant 0 : index
    %c0_12 = arith.constant 0 : index
    %20 = vector.load %arg6[%c0_11, %c0_12] : memref<8x256xf32, #tpu.memory_space<vmem>>, vector<8x256xf32>
    %21 = arith.addf %19, %20 : vector<8x256xf32>
    %cst_13 = arith.constant 0.000000e+00 : f32
    %22 = vector.broadcast %cst_13 : f32 to vector<8x256xf32>
    %23 = arith.maximumf %21, %22 : vector<8x256xf32>
    %24 = arith.addf %23, %0 : vector<8x256xf32>
    %c0_14 = arith.constant 0 : index
    %c0_15 = arith.constant 0 : index
    %25 = vector.load %arg7[%c0_14, %c0_15] : memref<8x256xf32, #tpu.memory_space<vmem>>, vector<8x256xf32>
    tpu.vector_store %arg7[%c0_14, %c0_15], %24 {strides = array<i32>} : memref<8x256xf32, #tpu.memory_space<vmem>>, vector<8x256xf32>,
    return
  }
  func.func @transform_0(%arg0: i32) -> (i32, i32) {
    %c0_i32 = arith.constant 0 : i32
    %c0_i32_0 = arith.constant 0 : i32
    return %c0_i32, %arg0 : i32, i32
  }
  func.func @transform_1(%arg0: i32) -> (i32, i32) {
    %c0_i32 = arith.constant 0 : i32
    %c0_i32_0 = arith.constant 0 : i32
    %c0_i32_1 = arith.constant 0 : i32
    return %c0_i32, %c0_i32_0 : i32, i32
  }
  func.func @transform_2(%arg0: i32) -> (i32, i32) {
    %c0_i32 = arith.constant 0 : i32
    %c0_i32_0 = arith.constant 0 : i32
    %c0_i32_1 = arith.constant 0 : i32
    return %c0_i32, %c0_i32_0 : i32, i32
  }
  func.func @transform_3(%arg0: i32) -> (i32, i32) {
    %c0_i32 = arith.constant 0 : i32
    %c0_i32_0 = arith.constant 0 : i32
    %c0_i32_1 = arith.constant 0 : i32
    return %c0_i32, %c0_i32_0 : i32, i32
  }
  func.func @transform_4(%arg0: i32) -> (i32, i32) {
    %c0_i32 = arith.constant 0 : i32
    %c0_i32_0 = arith.constant 0 : i32
    %c0_i32_1 = arith.constant 0 : i32
    return %c0_i32, %c0_i32_0 : i32, i32
  }
  func.func @transform_5(%arg0: i32) -> (i32, i32) {
    %c0_i32 = arith.constant 0 : i32
    %c0_i32_0 = arith.constant 0 : i32
    %c0_i32_1 = arith.constant 0 : i32
    return %c0_i32, %c0_i32_0 : i32, i32
  }
  func.func @transform_6(%arg0: i32) -> (i32, i32) {
    %c0_i32 = arith.constant 0 : i32
    %c0_i32_0 = arith.constant 0 : i32
    return %c0_i32, %arg0 : i32, i32
  }
}

</mosaic_0001>

<llo_original>
// kernel: tpu_custom_call.1
$region0: #{tpu_custom_call.1}
  #allocation0 [shape = 'u32[]', space=smem, size = 0x4, offset = 0x4, fixed_abs, tag = 'smem constant byte address 0x4 - core index']
  #allocation1 [shape = 'u32[144,128]{1,0:T(1,128)}', space=vmem, size = 0x12000, scoped, tag = 'internal scratch']
  %s0 = inlined_call_operand.hbm [shape: f32[8,512], index: 0, kind: input, shape index: {}]
  %s1 = inlined_call_operand.hbm [shape: f32[72,256], index: 1, kind: input, shape index: {}]
  %s2 = inlined_call_operand.hbm [shape: f32[8,72], index: 2, kind: input, shape index: {}]
  %s3 = inlined_call_operand.hbm [shape: f32[8,256], index: 3, kind: input, shape index: {}]
  %s4 = inlined_call_operand.hbm [shape: f32[8,8], index: 4, kind: input, shape index: {}]
  %s5 = inlined_call_operand.hbm [shape: f32[8,256], index: 5, kind: input, shape index: {}]
  %s6 = inlined_call_operand.hbm [shape: f32[8,512], index: 6, kind: output, shape index: {}]
  %s7 = sld [smem:[#allocation0]]
  $region81: #{tpu_custom_call.1} parent=0
    _
  %s9 = ssub.s32 1, %s7
  %s10 = scalar_select 0, %s9, %s7
  $region1: #{tpu_custom_call.1} parent=0
    #allocation2 [shape = 'u8[16384]{0}', space=vmem, size = 0x4000, scoped, tag = 'input window, operand 0']
    #allocation3 [shape = 's32[2]{0}', space=sflag, size = 0x8, scoped, tag = 'scoped memory for tpu_custom_call.1']
    #allocation4 [shape = 's32[2]{0}', space=sflag, size = 0x8, scoped, tag = 'scoped memory for tpu_custom_call.1']
    #allocation5 [shape = 'u8[73728]{0}', space=vmem, size = 0x12000, scoped, tag = 'input window, operand 1, single buffered']
    #allocation6 [shape = 's32[1]{0}', space=sflag, size = 0x4, scoped, tag = 'scoped memory for tpu_custom_call.1']
    #allocation7 [shape = 'u8[4096]{0}', space=vmem, size = 0x1000, scoped, tag = 'input window, operand 2, single buffered']
    #allocation8 [shape = 'u8[8192]{0}', space=vmem, size = 0x2000, scoped, tag = 'input window, operand 3, single buffered']
    #allocation9 [shape = 's32[1]{0}', space=sflag, size = 0x4, scoped, tag = 'scoped memory for tpu_custom_call.1']
    #allocation10 [shape = 'u8[4096]{0}', space=vmem, size = 0x1000, scoped, tag = 'input window, operand 4, single buffered']
    #allocation11 [shape = 'u8[8192]{0}', space=vmem, size = 0x2000, scoped, tag = 'input window, operand 5, single buffered']
    #allocation12 [shape = 's32[1]{0}', space=sflag, size = 0x4, scoped, tag = 'scoped memory for tpu_custom_call.1']
    #allocation13 [shape = 'u8[16384]{0}', space=vmem, size = 0x4000, scoped, tag = 'output window, operand 0']
    %11 = vsyncpa [#allocation3], 0
    %s12 = scalar_lea.sflag [#allocation3], 1
    %13 = vsyncpa %s12, 0
    %14 = vsyncpa [#allocation6], 0
    %15 = vsyncpa [#allocation9], 0
    %16 = vsyncpa [#allocation12], 0
    %17 = vsyncpa [#allocation4], 0
    %s18 = scalar_lea.sflag [#allocation4], 1
    %19 = vsyncpa %s18, 0
    loop: start=0, step=1, limit=4
    $region2: #{tpu_custom_call.1} parent=1 // loop_pre_header
      _
    $region3: #{tpu_custom_call.1} parent=1 // loop_header
      %s21 = sphi 0, %s25
      %p22 = scmp.ge.s32.totalorder %s21, 4
      %s31 = sphi 0, %s33
      %s34 = sphi 0, %s31
      %s35 = sphi 0, %s34
      %s51 = sphi 0, %s35
      %s55 = sphi 0, %s55
      %s57 = sphi 0, %s55
      %s58 = sphi 0, %s57
      %s72 = sphi 0, %s58
      %s76 = sphi 0, %s76
      %s78 = sphi 0, %s76
      %s79 = sphi 0, %s78
      %s93 = sphi 0, %s79
      %s97 = sphi 0, %s97
      %s99 = sphi 0, %s97
      %s100 = sphi 0, %s99
      %s114 = sphi 0, %s100
      %s118 = sphi 0, %s118
      %s120 = sphi 0, %s118
      %s121 = sphi 0, %s120
      %s135 = sphi 0, %s121
      %s139 = sphi 0, %s139
      %s141 = sphi 0, %s139
      %s142 = sphi 0, %s141
      %s156 = sphi 0, %s142
      %s162 = sphi 0, %s164
      %s165 = sphi 0, %s162
      %s166 = sphi 0, %s165
      %s182 = sphi 0, %s166
    $region4: #{tpu_custom_call.1} parent=1 // loop_header_branch
      %24 = sbr.rel (%p22) target = $region8
    $region5: #{tpu_custom_call.1} parent=1 // loop_body
      %s26 = ssub.s32 %s21, 1
      %s27 = ssub.s32 %s21, 2
      %s28 = sadd.s32 %s21, 1
      %s29 = ssub.s32 %s21, %s28
      %p30 = scmp.eq.s32.totalorder %s29, 0
      %s32 = sadd.s32 %s31, 1
      %s33 = scalar_select %p30, %s31, %s32
      %p36 = pneg %p30
      %p37 = scmp.eq.s32.totalorder %s21, 1
      %p38 = por %p36, %p37
      %p39 = scmp.ne.s32.totalorder %s31, %s34
      %p40 = scmp.eq.s32.totalorder %s21, 0
      %p41 = por %p39, %p40
      %p42 = scmp.ne.s32.totalorder %s31, %s34
      %p43 = scmp.eq.s32.totalorder %s26, 1
      %p44 = por %p42, %p43
      %p45 = scmp.ne.s32.totalorder %s34, %s35
      %p46 = scmp.eq.s32.totalorder %s26, 0
      %p47 = por %p45, %p46
      %p48 = scmp.ne.s32.totalorder %s34, %s35
      %p49 = scmp.eq.s32.totalorder %s27, 1
      %p50 = por %p48, %p49
      %p52 = scmp.ne.s32.totalorder %s35, %s51
      %p53 = scmp.eq.s32.totalorder %s27, 0
      %p54 = por %p52, %p53
      %s56 = sadd.s32 %s55, 1
      %p59 = scmp.eq.s32.totalorder %s21, 1
      %p60 = scmp.ne.s32.totalorder %s55, %s57
      %p61 = scmp.eq.s32.totalorder %s21, 0
      %p62 = por %p60, %p61
      %p63 = scmp.ne.s32.totalorder %s55, %s57
      %p64 = scmp.eq.s32.totalorder %s26, 1
      %p65 = por %p63, %p64
      %p66 = scmp.ne.s32.totalorder %s57, %s58
      %p67 = scmp.eq.s32.totalorder %s26, 0
      %p68 = por %p66, %p67
      %p69 = scmp.ne.s32.totalorder %s57, %s58
      %p70 = scmp.eq.s32.totalorder %s27, 1
      %p71 = por %p69, %p70
      %p73 = scmp.ne.s32.totalorder %s58, %s72
      %p74 = scmp.eq.s32.totalorder %s27, 0
      %p75 = por %p73, %p74
      %s77 = sadd.s32 %s76, 1
      %p80 = scmp.eq.s32.totalorder %s21, 1
      %p81 = scmp.ne.s32.totalorder %s76, %s78
      %p82 = scmp.eq.s32.totalorder %s21, 0
      %p83 = por %p81, %p82
      %p84 = scmp.ne.s32.totalorder %s76, %s78
      %p85 = scmp.eq.s32.totalorder %s26, 1
      %p86 = por %p84, %p85
      %p87 = scmp.ne.s32.totalorder %s78, %s79
      %p88 = scmp.eq.s32.totalorder %s26, 0
      %p89 = por %p87, %p88
      %p90 = scmp.ne.s32.totalorder %s78, %s79
      %p91 = scmp.eq.s32.totalorder %s27, 1
      %p92 = por %p90, %p91
      %p94 = scmp.ne.s32.totalorder %s79, %s93
      %p95 = scmp.eq.s32.totalorder %s27, 0
      %p96 = por %p94, %p95
      %s98 = sadd.s32 %s97, 1
      %p101 = scmp.eq.s32.totalorder %s21, 1
      %p102 = scmp.ne.s32.totalorder %s97, %s99
      %p103 = scmp.eq.s32.totalorder %s21, 0
      %p104 = por %p102, %p103
      %p105 = scmp.ne.s32.totalorder %s97, %s99
      %p106 = scmp.eq.s32.totalorder %s26, 1
      %p107 = por %p105, %p106
      %p108 = scmp.ne.s32.totalorder %s99, %s100
      %p109 = scmp.eq.s32.totalorder %s26, 0
      %p110 = por %p108, %p109
      %p111 = scmp.ne.s32.totalorder %s99, %s100
      %p112 = scmp.eq.s32.totalorder %s27, 1
      %p113 = por %p111, %p112
      %p115 = scmp.ne.s32.totalorder %s100, %s114
      %p116 = scmp.eq.s32.totalorder %s27, 0
      %p117 = por %p115, %p116
      %s119 = sadd.s32 %s118, 1
      %p122 = scmp.eq.s32.totalorder %s21, 1
      %p123 = scmp.ne.s32.totalorder %s118, %s120
      %p124 = scmp.eq.s32.totalorder %s21, 0
      %p125 = por %p123, %p124
      %p126 = scmp.ne.s32.totalorder %s118, %s120
      %p127 = scmp.eq.s32.totalorder %s26, 1
      %p128 = por %p126, %p127
      %p129 = scmp.ne.s32.totalorder %s120, %s121
      %p130 = scmp.eq.s32.totalorder %s26, 0
      %p131 = por %p129, %p130
      %p132 = scmp.ne.s32.totalorder %s120, %s121
      %p133 = scmp.eq.s32.totalorder %s27, 1
      %p134 = por %p132, %p133
      %p136 = scmp.ne.s32.totalorder %s121, %s135
      %p137 = scmp.eq.s32.totalorder %s27, 0
      %p138 = por %p136, %p137
      %s140 = sadd.s32 %s139, 1
      %p143 = scmp.eq.s32.totalorder %s21, 1
      %p144 = scmp.ne.s32.totalorder %s139, %s141
      %p145 = scmp.eq.s32.totalorder %s21, 0
      %p146 = por %p144, %p145
      %p147 = scmp.ne.s32.totalorder %s139, %s141
      %p148 = scmp.eq.s32.totalorder %s26, 1
      %p149 = por %p147, %p148
      %p150 = scmp.ne.s32.totalorder %s141, %s142
      %p151 = scmp.eq.s32.totalorder %s26, 0
      %p152 = por %p150, %p151
      %p153 = scmp.ne.s32.totalorder %s141, %s142
      %p154 = scmp.eq.s32.totalorder %s27, 1
      %p155 = por %p153, %p154
      %p157 = scmp.ne.s32.totalorder %s142, %s156
      %p158 = scmp.eq.s32.totalorder %s27, 0
      %p159 = por %p157, %p158
      %s160 = ssub.s32 %s21, %s28
      %p161 = scmp.eq.s32.totalorder %s160, 0
      %s163 = sadd.s32 %s162, 1
      %s164 = scalar_select %p161, %s162, %s163
      %p167 = pneg %p161
      %p168 = scmp.eq.s32.totalorder %s21, 1
      %p169 = por %p167, %p168
      %p170 = scmp.ne.s32.totalorder %s162, %s165
      %p171 = scmp.eq.s32.totalorder %s21, 0
      %p172 = por %p170, %p171
      %p173 = scmp.ne.s32.totalorder %s162, %s165
      %p174 = scmp.eq.s32.totalorder %s26, 1
      %p175 = por %p173, %p174
      %p176 = scmp.ne.s32.totalorder %s165, %s166
      %p177 = scmp.eq.s32.totalorder %s26, 0
      %p178 = por %p176, %p177
      %p179 = scmp.ne.s32.totalorder %s165, %s166
      %p180 = scmp.eq.s32.totalorder %s27, 1
      %p181 = por %p179, %p180
      %p183 = scmp.ne.s32.totalorder %s166, %s182
      %p184 = scmp.eq.s32.totalorder %s27, 0
      %p185 = por %p183, %p184
      %p186 = scmp.le.s32.totalorder 1, %s21
      %p187 = scmp.lt.s32.totalorder %s21, 3
      %p188 = pnand %p186, %p187
      %p189 = pneg %p188
      // Predicated region
      $region9: #{tpu_custom_call.1} parent=5 // pred_check
        _
      $region10: #{tpu_custom_call.1} parent=5 // pred_check_branch
        %191 = sbr.rel (%p188) target = $region12
      $region11: #{tpu_custom_call.1} parent=5 // pred_region
        %s192 = ssub.s32 %s21, 1
        // Predicated region
        $region13: #{tpu_custom_call.1} parent=11 // pred_check
          %p193 = pneg %p68
        $region14: #{tpu_custom_call.1} parent=11 // pred_check_branch
          %195 = sbr.rel (%p193) target = $region16
        $region15: #{tpu_custom_call.1} parent=11 // pred_region
          %s197 = ssub.s32 2304, 2304
          %198 = vsyncadd [#allocation6], %s197
          %s199 = sshll.u32 [#allocation5], 4
          %s200 = int_to_ptr.vmem [resolvable:$true] %s199
          %205 = dma.hbm_to_vmem [thread:$0]  %s1, 2304, %s200, [#allocation6], 256, 256, 16
        $region16: #{tpu_custom_call.1} parent=11 // pred_fallthru
          _
        // Predicated region
        $region17: #{tpu_custom_call.1} parent=11 // pred_check
          %p206 = pneg %p89
        $region18: #{tpu_custom_call.1} parent=11 // pred_check_branch
          %208 = sbr.rel (%p206) target = $region20
        $region19: #{tpu_custom_call.1} parent=11 // pred_region
          %s210 = ssub.s32 128, 128
          %211 = vsyncadd [#allocation6], %s210
          %s213 = sshll.u32 [#allocation7], 4
          %s214 = int_to_ptr.vmem [resolvable:$true] %s213
          %216 = dma.hbm_to_vmem [thread:$0]  %s2, 128, %s214, [#allocation6]
        $region20: #{tpu_custom_call.1} parent=11 // pred_fallthru
          _
        // Predicated region
        $region21: #{tpu_custom_call.1} parent=11 // pred_check
          %p217 = pneg %p110
        $region22: #{tpu_custom_call.1} parent=11 // pred_check_branch
          %219 = sbr.rel (%p217) target = $region24
        $region23: #{tpu_custom_call.1} parent=11 // pred_region
          %s221 = ssub.s32 256, 256
          %222 = vsyncadd [#allocation9], %s221
          %s224 = sshll.u32 [#allocation8], 4
          %s225 = int_to_ptr.vmem [resolvable:$true] %s224
          %227 = dma.hbm_to_vmem [thread:$0]  %s3, 256, %s225, [#allocation9]
        $region24: #{tpu_custom_call.1} parent=11 // pred_fallthru
          _
        // Predicated region
        $region25: #{tpu_custom_call.1} parent=11 // pred_check
          %p228 = pneg %p131
        $region26: #{tpu_custom_call.1} parent=11 // pred_check_branch
          %230 = sbr.rel (%p228) target = $region28
        $region27: #{tpu_custom_call.1} parent=11 // pred_region
          %s232 = ssub.s32 128, 128
          %233 = vsyncadd [#allocation9], %s232
          %s235 = sshll.u32 [#allocation10], 4
          %s236 = int_to_ptr.vmem [resolvable:$true] %s235
          %238 = dma.hbm_to_vmem [thread:$0]  %s4, 128, %s236, [#allocation9]
        $region28: #{tpu_custom_call.1} parent=11 // pred_fallthru
          _
        // Predicated region
        $region29: #{tpu_custom_call.1} parent=11 // pred_check
          %p239 = pneg %p152
        $region30: #{tpu_custom_call.1} parent=11 // pred_check_branch
          %241 = sbr.rel (%p239) target = $region32
        $region31: #{tpu_custom_call.1} parent=11 // pred_region
          %s243 = ssub.s32 256, 256
          %244 = vsyncadd [#allocation12], %s243
          %s246 = sshll.u32 [#allocation11], 4
          %s247 = int_to_ptr.vmem [resolvable:$true] %s246
          %249 = dma.hbm_to_vmem [thread:$0]  %s5, 256, %s247, [#allocation12]
        $region32: #{tpu_custom_call.1} parent=11 // pred_fallthru
          _
      $region12: #{tpu_custom_call.1} parent=5 // pred_fallthru
        _
      %p250 = scmp.lt.s32.totalorder %s21, 2
      // Predicated region
      $region33: #{tpu_custom_call.1} parent=5 // pred_check
        %p251 = pneg %p250
      $region34: #{tpu_custom_call.1} parent=5 // pred_check_branch
        %253 = sbr.rel (%p251) target = $region36
      $region35: #{tpu_custom_call.1} parent=5 // pred_region
        // Predicated region
        $region37: #{tpu_custom_call.1} parent=35 // pred_check
          %p254 = pneg %p41
        $region38: #{tpu_custom_call.1} parent=35 // pred_check_branch
          %256 = sbr.rel (%p254) target = $region40
        $region39: #{tpu_custom_call.1} parent=35 // pred_region
          %s257 = sand.u32 %s31, 1
          %s258 = scalar_lea.sflag [#allocation3], %s257
          %s259 = sand.u32 %s31, 1
          %s260 = smul.addr %s259, 16
          %s261 = scalar_lea.vmem [#allocation2], %s260
          %s262 = smul.u32 2, %s21
          %s264 = ssub.s32 256, 256
          %265 = vsyncadd %s258, %s264
          %s266 = smul.addr %s262, 128
          %s267 = scalar_lea.hbm %s0, %s266
          %s269 = sshll.u32 %s261, 4
          %s270 = int_to_ptr.vmem [resolvable:$true] %s269
          %272 = dma.hbm_to_vmem [thread:$0]  %s267, 256, %s270, %s258
        $region40: #{tpu_custom_call.1} parent=35 // pred_fallthru
          _
      $region36: #{tpu_custom_call.1} parent=5 // pred_fallthru
        _
      %p273 = scmp.le.s32.totalorder 1, %s21
      %p274 = scmp.lt.s32.totalorder %s21, 3
      %p275 = pnand %p273, %p274
      %p276 = pneg %p275
      // Predicated region
      $region41: #{tpu_custom_call.1} parent=5 // pred_check
        _
      $region42: #{tpu_custom_call.1} parent=5 // pred_check_branch
        %278 = sbr.rel (%p275) target = $region44
      $region43: #{tpu_custom_call.1} parent=5 // pred_region
        %s279 = ssub.s32 %s21, 1
        %s280 = sand.u32 %s34, 1
        %s281 = scalar_lea.sflag [#allocation3], %s280
        %s282 = sand.u32 %s34, 1
        %s283 = smul.addr %s282, 16
        %s284 = scalar_lea.vmem [#allocation2], %s283
        // Predicated region
        $region45: #{tpu_custom_call.1} parent=43 // pred_check
          %p285 = pneg %p47
        $region46: #{tpu_custom_call.1} parent=43 // pred_check_branch
          %287 = sbr.rel (%p285) target = $region48
        $region47: #{tpu_custom_call.1} parent=43 // pred_region
          %288 = dma.done %s281, 256
        $region48: #{tpu_custom_call.1} parent=43 // pred_fallthru
          _
        // Predicated region
        $region49: #{tpu_custom_call.1} parent=43 // pred_check
          %p289 = pneg %p68
        $region50: #{tpu_custom_call.1} parent=43 // pred_check_branch
          %291 = sbr.rel (%p289) target = $region52
        $region51: #{tpu_custom_call.1} parent=43 // pred_region
          %292 = dma.done [#allocation6], 2304
        $region52: #{tpu_custom_call.1} parent=43 // pred_fallthru
          _
        // Predicated region
        $region53: #{tpu_custom_call.1} parent=43 // pred_check
          %p293 = pneg %p89
        $region54: #{tpu_custom_call.1} parent=43 // pred_check_branch
          %295 = sbr.rel (%p293) target = $region56
        $region55: #{tpu_custom_call.1} parent=43 // pred_region
          %296 = dma.done [#allocation6], 128
        $region56: #{tpu_custom_call.1} parent=43 // pred_fallthru
          _
        // Predicated region
        $region57: #{tpu_custom_call.1} parent=43 // pred_check
          %p297 = pneg %p110
        $region58: #{tpu_custom_call.1} parent=43 // pred_check_branch
          %299 = sbr.rel (%p297) target = $region60
        $region59: #{tpu_custom_call.1} parent=43 // pred_region
          %300 = dma.done [#allocation9], 256
        $region60: #{tpu_custom_call.1} parent=43 // pred_fallthru
          _
        // Predicated region
        $region61: #{tpu_custom_call.1} parent=43 // pred_check
          %p301 = pneg %p131
        $region62: #{tpu_custom_call.1} parent=43 // pred_check_branch
          %303 = sbr.rel (%p301) target = $region64
        $region63: #{tpu_custom_call.1} parent=43 // pred_region
          %304 = dma.done [#allocation9], 128
        $region64: #{tpu_custom_call.1} parent=43 // pred_fallthru
          _
        // Predicated region
        $region65: #{tpu_custom_call.1} parent=43 // pred_check
          %p305 = pneg %p152
        $region66: #{tpu_custom_call.1} parent=43 // pred_check_branch
          %307 = sbr.rel (%p305) target = $region68
        $region67: #{tpu_custom_call.1} parent=43 // pred_region
          %308 = dma.done [#allocation12], 256
        $region68: #{tpu_custom_call.1} parent=43 // pred_fallthru
          _
        %s309 = sand.u32 %s34, 1
        %s310 = scalar_lea.sflag [#allocation3], %s309
        %s311 = sand.u32 %s34, 1
        %s312 = smul.addr %s311, 16
        %s313 = scalar_lea.vmem [#allocation2], %s312
        %p314 = pneg %p47
        %p315 = pneg %p44
        %p316 = pneg %p68
        %p317 = pneg %p65
        %p318 = pneg %p89
        %p319 = pneg %p86
        %p320 = pneg %p110
        %p321 = pneg %p107
        %p322 = pneg %p131
        %p323 = pneg %p128
        %p324 = pneg %p152
        %p325 = pneg %p149
        %p326 = pneg %p178
        %p327 = pneg %p175
        %s328 = sand.u32 %s165, 1
        %s329 = scalar_lea.sflag [#allocation4], %s328
        %s330 = sand.u32 %s165, 1
        %s331 = smul.addr %s330, 16
        %s332 = scalar_lea.vmem [#allocation13], %s331
        %s333 = smul.u32 2, %s26
        %s334 = smul.u32 2, %s26
        %v335 = vld [vmem:[%s284] sm:$0xff]
        %v336 = vld [vmem:[%s284 + $0x8] sm:$0xff]
        %337 = vrot.lane.b32.xlu0 %v335, 17
        %v338 = vpop.permute.xlu0 %337
        %339 = vrot.lane.b32.xlu0 %v336, 17
        %v340 = vpop.permute.xlu0 %339
        %v341 = vlaneseq
        %v342 = vand.u32 %v341, 127
        %vm343 = vcmp.lt.s32.totalorder %v342, 17
        %v344 = vsel %vm343, %v338, %v340
        %v345 = vsel %vm343, %v340, %v338
        %346 = vrot.lane.b32.xlu0 %v335, 16
        %v347 = vpop.permute.xlu0 %346
        %348 = vrot.lane.b32.xlu0 %v336, 16
        %v349 = vpop.permute.xlu0 %348
        %vm350 = vcmp.lt.s32.totalorder %v342, 16
        %v351 = vsel %vm350, %v347, %v349
        %v352 = vsel %vm350, %v349, %v347
        %353 = vrot.lane.b32.xlu0 %v335, 15
        %v354 = vpop.permute.xlu0 %353
        %355 = vrot.lane.b32.xlu0 %v336, 15
        %v356 = vpop.permute.xlu0 %355
        %vm357 = vcmp.lt.s32.totalorder %v342, 15
        %v358 = vsel %vm357, %v354, %v356
        %v359 = vsel %vm357, %v356, %v354
        %360 = vrot.lane.b32.xlu0 %v335, 1
        %v361 = vpop.permute.xlu0 %360
        %362 = vrot.lane.b32.xlu0 %v336, 1
        %v363 = vpop.permute.xlu0 %362
        %vm364 = vcmp.lt.s32.totalorder %v342, 1
        %v365 = vsel %vm364, %v361, %v363
        %v366 = vsel %vm364, %v363, %v361
        %367 = vrot.lane.b32.xlu0 %v335, 127
        %v368 = vpop.permute.xlu0 %367
        %369 = vrot.lane.b32.xlu0 %v336, 127
        %v370 = vpop.permute.xlu0 %369
        %vm371 = vcmp.lt.s32.totalorder %v342, 127
        %v372 = vsel %vm371, %v368, %v370
        %v373 = vsel %vm371, %v370, %v368
        %374 = vrot.lane.b32.xlu0 %v335, 113
        %v375 = vpop.permute.xlu0 %374
        %376 = vrot.lane.b32.xlu0 %v336, 113
        %v377 = vpop.permute.xlu0 %376
        %vm378 = vcmp.lt.s32.totalorder %v342, 113
        %v379 = vsel %vm378, %v375, %v377
        %v380 = vsel %vm378, %v377, %v375
        %381 = vrot.lane.b32.xlu0 %v335, 112
        %v382 = vpop.permute.xlu0 %381
        %383 = vrot.lane.b32.xlu0 %v336, 112
        %v384 = vpop.permute.xlu0 %383
        %vm385 = vcmp.lt.s32.totalorder %v342, 112
        %v386 = vsel %vm385, %v382, %v384
        %v387 = vsel %vm385, %v384, %v382
        %388 = vrot.lane.b32.xlu0 %v335, 111
        %v389 = vpop.permute.xlu0 %388
        %390 = vrot.lane.b32.xlu0 %v336, 111
        %v391 = vpop.permute.xlu0 %390
        %vm392 = vcmp.lt.s32.totalorder %v342, 111
        %v393 = vsel %vm392, %v389, %v391
        %v394 = vsel %vm392, %v391, %v389
        %v395 = vld [vmem:[#allocation5] sm:$0xff]
        %v396 = vld [vmem:[#allocation5 + $0x8] sm:$0xff]
        %v397 = vld [vmem:[#allocation5 + $0x10] sm:$0xff]
        %v398 = vld [vmem:[#allocation5 + $0x18] sm:$0xff]
        %v399 = vld [vmem:[#allocation5 + $0x20] sm:$0xff]
        %v400 = vld [vmem:[#allocation5 + $0x28] sm:$0xff]
        %v401 = vld [vmem:[#allocation5 + $0x30] sm:$0xff]
        %v402 = vld [vmem:[#allocation5 + $0x38] sm:$0xff]
        %v403 = vld [vmem:[#allocation5 + $0x40] sm:$0xff]
        %v404 = vld [vmem:[#allocation5 + $0x48] sm:$0xff]
        %v405 = vld [vmem:[#allocation5 + $0x50] sm:$0xff]
        %v406 = vld [vmem:[#allocation5 + $0x58] sm:$0xff]
        %v407 = vld [vmem:[#allocation5 + $0x60] sm:$0xff]
        %v408 = vld [vmem:[#allocation5 + $0x68] sm:$0xff]
        %v409 = vld [vmem:[#allocation5 + $0x70] sm:$0xff]
        %v410 = vld [vmem:[#allocation5 + $0x78] sm:$0xff]
        %v411 = vld [vmem:[#allocation5 + $0x80] sm:$0xff]
        %v412 = vld [vmem:[#allocation5 + $0x88] sm:$0xff]
        %v413 = vmul.f32 %v345, %v395
        %v414 = vmul.f32 %v344, %v396
        %v415 = vmul.f32 %v352, %v397
        %v416 = vmul.f32 %v351, %v398
        %v417 = vmul.f32 %v359, %v399
        %v418 = vmul.f32 %v358, %v400
        %v419 = vmul.f32 %v366, %v401
        %v420 = vmul.f32 %v365, %v402
        %v421 = vmul.f32 %v335, %v403
        %v422 = vmul.f32 %v336, %v404
        %v423 = vmul.f32 %v372, %v405
        %v424 = vmul.f32 %v373, %v406
        %v425 = vmul.f32 %v379, %v407
        %v426 = vmul.f32 %v380, %v408
        %v427 = vmul.f32 %v386, %v409
        %v428 = vmul.f32 %v387, %v410
        %v429 = vmul.f32 %v393, %v411
        %v430 = vmul.f32 %v394, %v412
        %v431 = vld [vmem:[#allocation7] sm:$0xff]
        %v432 = vld [vmem:[#allocation8] sm:$0xff]
        %v433 = vld [vmem:[#allocation8 + $0x8] sm:$0xff]
        %vm434 = vcmask 588800
        %v436 = vsel %vm434, %v431, 0
        %438 = vmatprep.subr.mxu0 0.0
        %439 = vmatpush1.msra.mxu0 0.0
        %440 = vmatprep.subr.mxu0 0.0
        %441 = vmatpush1.msra.mxu0 0.0
        %442 = vmatprep.subr.mxu0 0.0
        %443 = vmatpush1.msra.mxu0 0.0
        %444 = vmatprep.subr.mxu0 0.0
        %445 = vmatpush1.msra.mxu0 0.0
        %446 = vmatprep.subr.mxu0 0.0
        %447 = vmatpush1.msra.mxu0 0.0
        %448 = vmatprep.subr.mxu0 0.0
        %449 = vmatpush1.msra.mxu0 0.0
        %450 = vmatprep.subr.mxu0 0.0
        %451 = vmatpush1.msra.mxu0 0.0
        %452 = vmatprep.subr.mxu0 %v430
        %453 = vmatpush1.msra.mxu0 %v429
        %454 = vmatprep.subr.mxu0 %v428
        %455 = vmatpush1.msra.mxu0 %v427
        %456 = vmatprep.subr.mxu0 %v426
        %457 = vmatpush1.msra.mxu0 %v425
        %458 = vmatprep.subr.mxu0 %v424
        %459 = vmatpush1.msra.mxu0 %v423
        %460 = vmatprep.subr.mxu0 %v422
        %461 = vmatpush1.msra.mxu0 %v421
        %462 = vmatprep.subr.mxu0 %v420
        %463 = vmatpush1.msra.mxu0 %v419
        %464 = vmatprep.subr.mxu0 %v418
        %465 = vmatpush1.msra.mxu0 %v417
        %466 = vmatprep.subr.mxu0 %v416
        %467 = vmatpush1.msra.mxu0 %v415
        %468 = vmatprep.subr.mxu0 %v414
        %469 = vmatpush1.msra.mxu0 %v413
        %470 = vmatprep.subr.mxu0 0.0
        %471 = vmatpush2.msra.mxu0 0.0
        %472 = vmatprep.subr.mxu0 0.0
        %473 = vmatpush2.msra.mxu0 0.0
        %474 = vmatprep.subr.mxu0 0.0
        %475 = vmatpush2.msra.mxu0 0.0
        %476 = vmatprep.subr.mxu0 0.0
        %477 = vmatpush2.msra.mxu0 0.0
        %478 = vmatprep.subr.mxu0 0.0
        %479 = vmatpush2.msra.mxu0 0.0
        %480 = vmatprep.subr.mxu0 0.0
        %481 = vmatpush2.msra.mxu0 0.0
        %482 = vmatprep.subr.mxu0 0.0
        %483 = vmatpush2.msra.mxu0 0.0
        %484 = vmatprep.subr.mxu0 0.0
        %485 = vmatpush2.msra.mxu0 0.0
        %486 = vmatprep.subr.mxu0 0.0
        %487 = vmatpush2.msra.mxu0 0.0
        %488 = vmatprep.subr.mxu0 0.0
        %489 = vmatpush2.msra.mxu0 0.0
        %490 = vmatprep.subr.mxu0 0.0
        %491 = vmatpush2.msra.mxu0 0.0
        %492 = vmatprep.subr.mxu0 0.0
        %493 = vmatpush2.msra.mxu0 0.0
        %494 = vmatprep.subr.mxu0 0.0
        %495 = vmatpush2.msra.mxu0 0.0
        %496 = vmatprep.subr.mxu0 0.0
        %497 = vmatpush2.msra.mxu0 0.0
        %498 = vmatprep.subr.mxu0 0.0
        %499 = vmatpush2.msra.mxu0 0.0
        %500 = vmatprep.subr.mxu0 0.0
        %501 = vmatpush2.msra.mxu0 0.0
        %502 = vmatprep.mubr.f32.mxu0 0.0
        %503 = vmatmul.mubr.f32.gmra.mxu0 %v436
        %v504 = vpop.f32.mrf.mxu0
        %v505 = vadd.f32 %v432, %v504
        %v506 = vpop.f32.mrf.mxu0
        %v507 = vadd.f32 %v433, %v506
        %508 = vdwg.mxu0
        %v509 = vmax.f32 %v505, 0.0
        %v510 = vmax.f32 %v507, 0.0
        %v511 = vld [vmem:[#allocation10] sm:$0xff]
        %v512 = vld [vmem:[#allocation11] sm:$0xff]
        %v513 = vld [vmem:[#allocation11 + $0x8] sm:$0xff]
        %vm514 = vcmask 64512
        %v516 = vsel %vm514, %v511, 0
        %518 = vmatprep.subr.mxu0 0.0
        %519 = vmatpush1.msra.mxu0 0.0
        %520 = vmatprep.subr.mxu0 0.0
        %521 = vmatpush1.msra.mxu0 0.0
        %522 = vmatprep.subr.mxu0 0.0
        %523 = vmatpush1.msra.mxu0 0.0
        %524 = vmatprep.subr.mxu0 0.0
        %525 = vmatpush1.msra.mxu0 0.0
        %526 = vmatprep.subr.mxu0 0.0
        %527 = vmatpush1.msra.mxu0 0.0
        %528 = vmatprep.subr.mxu0 0.0
        %529 = vmatpush1.msra.mxu0 0.0
        %530 = vmatprep.subr.mxu0 0.0
        %531 = vmatpush1.msra.mxu0 0.0
        %532 = vmatprep.subr.mxu0 0.0
        %533 = vmatpush1.msra.mxu0 0.0
        %534 = vmatprep.subr.mxu0 0.0
        %535 = vmatpush1.msra.mxu0 0.0
        %536 = vmatprep.subr.mxu0 0.0
        %537 = vmatpush1.msra.mxu0 0.0
        %538 = vmatprep.subr.mxu0 0.0
        %539 = vmatpush1.msra.mxu0 0.0
        %540 = vmatprep.subr.mxu0 0.0
        %541 = vmatpush1.msra.mxu0 0.0
        %542 = vmatprep.subr.mxu0 0.0
        %543 = vmatpush1.msra.mxu0 0.0
        %544 = vmatprep.subr.mxu0 0.0
        %545 = vmatpush1.msra.mxu0 0.0
        %546 = vmatprep.subr.mxu0 0.0
        %547 = vmatpush1.msra.mxu0 0.0
        %548 = vmatprep.subr.mxu0 %v510
        %549 = vmatpush1.msra.mxu0 %v509
        %550 = vmatprep.subr.mxu0 0.0
        %551 = vmatpush2.msra.mxu0 0.0
        %552 = vmatprep.subr.mxu0 0.0
        %553 = vmatpush2.msra.mxu0 0.0
        %554 = vmatprep.subr.mxu0 0.0
        %555 = vmatpush2.msra.mxu0 0.0
        %556 = vmatprep.subr.mxu0 0.0
        %557 = vmatpush2.msra.mxu0 0.0
        %558 = vmatprep.subr.mxu0 0.0
        %559 = vmatpush2.msra.mxu0 0.0
        %560 = vmatprep.subr.mxu0 0.0
        %561 = vmatpush2.msra.mxu0 0.0
        %562 = vmatprep.subr.mxu0 0.0
        %563 = vmatpush2.msra.mxu0 0.0
        %564 = vmatprep.subr.mxu0 0.0
        %565 = vmatpush2.msra.mxu0 0.0
        %566 = vmatprep.subr.mxu0 0.0
        %567 = vmatpush2.msra.mxu0 0.0
        %568 = vmatprep.subr.mxu0 0.0
        %569 = vmatpush2.msra.mxu0 0.0
        %570 = vmatprep.subr.mxu0 0.0
        %571 = vmatpush2.msra.mxu0 0.0
        %572 = vmatprep.subr.mxu0 0.0
        %573 = vmatpush2.msra.mxu0 0.0
        %574 = vmatprep.subr.mxu0 0.0
        %575 = vmatpush2.msra.mxu0 0.0
        %576 = vmatprep.subr.mxu0 0.0
        %577 = vmatpush2.msra.mxu0 0.0
        %578 = vmatprep.subr.mxu0 0.0
        %579 = vmatpush2.msra.mxu0 0.0
        %580 = vmatprep.subr.mxu0 0.0
        %581 = vmatpush2.msra.mxu0 0.0
        %582 = vmatprep.mubr.f32.mxu0 0.0
        %583 = vmatmul.mubr.f32.gmra.mxu0 %v516
        %v584 = vpop.f32.mrf.mxu0
        %v585 = vadd.f32 %v512, %v584
        %v586 = vpop.f32.mrf.mxu0
        %v587 = vadd.f32 %v513, %v586
        %588 = vdwg.mxu0
        %v589 = vmax.f32 %v585, 0.0
        %v590 = vmax.f32 %v587, 0.0
        %v591 = vadd.f32 %v589, %v335
        %v592 = vadd.f32 %v590, %v336
        %593 = vst [vmem:[%s332] sm:$0xff] %v591
        %594 = vst [vmem:[%s332 + $0x8] sm:$0xff] %v592
        %s595 = sand.u32 %s165, 1
        %s596 = scalar_lea.sflag [#allocation4], %s595
        %s597 = sand.u32 %s165, 1
        %s598 = smul.addr %s597, 16
        %s599 = scalar_lea.vmem [#allocation13], %s598
        // Predicated region
        $region69: #{tpu_custom_call.1} parent=43 // pred_check
          %p600 = pneg %p175
        $region70: #{tpu_custom_call.1} parent=43 // pred_check_branch
          %602 = sbr.rel (%p600) target = $region72
        $region71: #{tpu_custom_call.1} parent=43 // pred_region
          %s603 = smul.u32 2, %s26
          %s605 = ssub.s32 256, 256
          %606 = vsyncadd %s596, %s605
          %s607 = smul.addr %s603, 128
          %s608 = scalar_lea.hbm %s6, %s607
          %s610 = sshll.u32 %s599, 4
          %s611 = int_to_ptr.vmem [resolvable:$true] %s610
          %613 = dma.vmem_to_hbm [thread:$0]  %s611, 256, %s608, %s596
        $region72: #{tpu_custom_call.1} parent=43 // pred_fallthru
          _
      $region44: #{tpu_custom_call.1} parent=5 // pred_fallthru
        _
      %p614 = scmp.le.s32.totalorder 2, %s21
      // Predicated region
      $region73: #{tpu_custom_call.1} parent=5 // pred_check
        %p615 = pneg %p614
      $region74: #{tpu_custom_call.1} parent=5 // pred_check_branch
        %617 = sbr.rel (%p615) target = $region76
      $region75: #{tpu_custom_call.1} parent=5 // pred_region
        %s618 = ssub.s32 %s21, 2
        // Predicated region
        $region77: #{tpu_custom_call.1} parent=75 // pred_check
          %p619 = pneg %p181
        $region78: #{tpu_custom_call.1} parent=75 // pred_check_branch
          %621 = sbr.rel (%p619) target = $region80
        $region79: #{tpu_custom_call.1} parent=75 // pred_region
          %s622 = sand.u32 %s166, 1
          %s623 = scalar_lea.sflag [#allocation4], %s622
          %s624 = sand.u32 %s166, 1
          %s625 = smul.addr %s624, 16
          %s626 = scalar_lea.vmem [#allocation13], %s625
          %627 = dma.done %s623, 256
        $region80: #{tpu_custom_call.1} parent=75 // pred_fallthru
          _
      $region76: #{tpu_custom_call.1} parent=5 // pred_fallthru
        _
    $region6: #{tpu_custom_call.1} parent=1 // loop_footer
      %s25 = sadd.s32 1, %s21
    $region7: #{tpu_custom_call.1} parent=1 // loop_footer_branch
      %20 = sbr.rel target = $region3
    $region8: #{tpu_custom_call.1} parent=1 // loop_exit
      _
    %628 = vsyncpa [#allocation3], 1
    %s629 = scalar_lea.sflag [#allocation3], 1
    %630 = vsyncpa %s629, 1
    %631 = vsyncpa [#allocation6], 1
    %632 = vsyncpa [#allocation9], 1
    %633 = vsyncpa [#allocation12], 1
    %634 = vsyncpa [#allocation4], 1
    %s635 = scalar_lea.sflag [#allocation4], 1
    %636 = vsyncpa %s635, 1

</llo_original>
